<compile_context>
chip_gen: v5e
topology: v5e:2x2
jax: 0.10.0
libtpu: 0.0.40
codegen_flags: <defaults>
</compile_context>

<pallas_src>
import functools

import jax
import jax.numpy as jnp
from jax.experimental import pallas as pl
from jax.experimental.pallas import tpu as pltpu

LANE = 128
SUBLANE = 8


def _round_up(x, m):
    return ((x + m - 1) // m) * m


def _mlp_kernel(x_ref, w1_ref, b1_ref, w2_ref, b2_ref, o_ref):
    # fc1: x @ W1 + b1 -> ReLU -> fc2: h @ W2 + b2, all on-chip for one batch tile.
    # Weights/biases are resident full-array VMEM blocks (index_map never changes).
    h = jnp.dot(x_ref[...], w1_ref[...], preferred_element_type=jnp.float32)
    h = h + b1_ref[...].astype(jnp.float32)
    h = jnp.maximum(h, 0.0).astype(w2_ref.dtype)
    out = jnp.dot(h, w2_ref[...], preferred_element_type=jnp.float32)
    out = out + b2_ref[...].astype(jnp.float32)
    o_ref[...] = out.astype(o_ref.dtype)


@functools.partial(jax.jit, static_argnames=("tile_b",))
def simple_nn_forward(x, w1, b1, w2, b2, *, tile_b=8192):
    """Forward pass of SimpleNN.

    x:  [B, context_dim]
    w1: [context_dim, 64]   (already transposed: [in_features, out_features])
    b1: [64]
    w2: [64, n_arms]
    b2: [n_arms]
    Returns [B, n_arms] in x.dtype (f32 accumulation inside the kernel).
    """
    B, context_dim = x.shape
    hidden = w1.shape[1]
    n_arms = w2.shape[1]
    out_dtype = x.dtype

    # --- Batch padding: only up to the next sublane multiple (<=7 rows) ------
    b_pad = _round_up(B, SUBLANE)
    x_p = x if b_pad == B else jnp.pad(x, ((0, b_pad - B), (0, 0)))

    # --- Batch tile selection -------------------------------------------------
    # Multiple of 8, capped so double-buffered x+out tiles stay <= ~16 MiB,
    # and forced to give >= 2 grid steps when possible (v7x megacore).
    itemsize = jnp.dtype(x.dtype).itemsize
    bytes_per_row = max(1, (context_dim + n_arms) * itemsize)
    tile_vmem_budget = 16 * 1024 * 1024  # double-buffered x+out tile budget
    max_rows = max(SUBLANE, (tile_vmem_budget // (2 * bytes_per_row)) // SUBLANE * SUBLANE)

    tile_b_eff = max(SUBLANE, (min(tile_b, b_pad) // SUBLANE) * SUBLANE)
    tile_b_eff = min(tile_b_eff, max_rows)
    if b_pad >= 2 * SUBLANE:
        # Ensure at least two grid steps so the "parallel" axis maps work to
        # both TensorCores on v7x (harmless ~0.35us extra step on v5e/v6e).
        tile_b_eff = min(tile_b_eff, _round_up(pl.cdiv(b_pad, 2), SUBLANE))

    grid = (pl.cdiv(b_pad, tile_b_eff),)

    # Biases as 2-D rows for lane layout (tiny, resident).
    b1_2d = b1.reshape(1, hidden)
    b2_2d = b2.reshape(1, n_arms)

    out = pl.pallas_call(
        _mlp_kernel,
        out_shape=jax.ShapeDtypeStruct((b_pad, n_arms), out_dtype),
        grid=grid,
        in_specs=[
            # x: tiled over batch; native (unpadded) feature dim = full last dim.
            pl.BlockSpec((tile_b_eff, context_dim), lambda i: (i, 0)),
            # Weights / biases: full arrays, constant index_map -> stay resident.
            pl.BlockSpec((context_dim, hidden), lambda i: (0, 0)),
            pl.BlockSpec((1, hidden), lambda i: (0, 0)),
            pl.BlockSpec((hidden, n_arms), lambda i: (0, 0)),
            pl.BlockSpec((1, n_arms), lambda i: (0, 0)),
        ],
        # Compact output: last dim = n_arms (full array dim), no column padding.
        out_specs=pl.BlockSpec((tile_b_eff, n_arms), lambda i: (i, 0)),
        compiler_params=pltpu.CompilerParams(
            dimension_semantics=("parallel",),      # megacore batch sharding on v7x
            vmem_limit_bytes=48 * 1024 * 1024,      # tiles capped at ~16 MiB; safe on v7x's 64 MiB
        ),
    )(x_p, w1, b1_2d, w2, b2_2d)

    return out if b_pad == B else out[:B]


def init_params(key, context_dim, n_arms, hidden=64):
    """Deterministic init mimicking nn.Linear's U(-1/sqrt(fan_in), 1/sqrt(fan_in))."""
    k1, k2, k3, k4 = jax.random.split(key, 4)
    bound1 = 1.0 / jnp.sqrt(context_dim)
    bound2 = 1.0 / jnp.sqrt(hidden)
    # Stored already transposed: [in_features, out_features]
    w1 = jax.random.uniform(k1, (context_dim, hidden), jnp.float32, -bound1, bound1)
    b1 = jax.random.uniform(k2, (hidden,), jnp.float32, -bound1, bound1)
    w2 = jax.random.uniform(k3, (hidden, n_arms), jnp.float32, -bound2, bound2)
    b2 = jax.random.uniform(k4, (n_arms,), jnp.float32, -bound2, bound2)
    return w1, b1, w2, b2


if __name__ == "__main__":
    key = jax.random.PRNGKey(0)
    kx, kp = jax.random.split(key)

    batch = 8
    context_dim = 32
    n_arms = 8

    x = jax.random.normal(kx, (batch, context_dim), dtype=jnp.float32)
    w1, b1, w2, b2 = init_params(kp, context_dim, n_arms)

    # Reference in plain JAX (same math as the PyTorch forward).
    ref = jnp.maximum(x @ w1 + b1, 0.0) @ w2 + b2

    # f32 path: exact semantics, tight tolerance.
    out_f32 = simple_nn_forward(x, w1, b1, w2, b2)
    out_f32 = jax.block_until_ready(out_f32)
    assert out_f32.shape == (batch, n_arms)
    assert jnp.allclose(out_f32, ref, atol=1e-5, rtol=1e-5)

    # bf16-producer path: inputs already stored in bf16 (cast once, outside the
    # hot path — the kernel itself does no wrapper-side dtype conversion).
    x_bf = x.astype(jnp.bfloat16)
    w1_bf = w1.astype(jnp.bfloat16)
    w2_bf = w2.astype(jnp.bfloat16)
    out_bf = simple_nn_forward(x_bf, w1_bf, b1, w2_bf, b2)
    out_bf = jax.block_until_ready(out_bf)
    assert out_bf.shape == (batch, n_arms)
    assert jnp.allclose(out_bf.astype(jnp.float32), ref, atol=5e-2, rtol=5e-2)

    print("KERNEL_OK")
</pallas_src>

<mosaic_0001>
module attributes {stable_mosaic.version = 11 : i64} {
  func.func @_mlp_kernel(%arg0: i32, %arg1: memref<8x32xf32, #tpu.memory_space<vmem>>, %arg2: memref<32x64xf32, #tpu.memory_space<vmem>>, %arg3: memref<1x64xf32, #tpu.memory_space<vmem>>, %arg4: memref<64x8xf32, #tpu.memory_space<vmem>>, %arg5: memref<1x8xf32, #tpu.memory_space<vmem>>, %arg6: memref<8x8xf32, #tpu.memory_space<vmem>>) attributes {dimension_semantics = [#tpu.dimension_semantics<parallel>], iteration_bounds = array<i64: 1>, scalar_prefetch = 0 : i64, scratch_operands = 0 : i64, tpu.core_type = #tpu.core_type<tc>, window_params = [{transform_indices = @transform_0, window_bounds = array<i64: 8, 32>}, {pipeline_mode = #tpu.pipeline_mode<synchronous>, transform_indices = @transform_1, window_bounds = array<i64: 32, 64>}, {pipeline_mode = #tpu.pipeline_mode<synchronous>, transform_indices = @transform_2, window_bounds = array<i64: 1, 64>}, {pipeline_mode = #tpu.pipeline_mode<synchronous>, transform_indices = @transform_3, window_bounds = array<i64: 64, 8>}, {pipeline_mode = #tpu.pipeline_mode<synchronous>, transform_indices = @transform_4, window_bounds = array<i64: 1, 8>}, {transform_indices = @transform_5, window_bounds = array<i64: 8, 8>}]} {
    %c0 = arith.constant 0 : index
    %c0_0 = arith.constant 0 : index
    %0 = vector.load %arg1[%c0, %c0_0] : memref<8x32xf32, #tpu.memory_space<vmem>>, vector<8x32xf32>
    %c0_1 = arith.constant 0 : index
    %c0_2 = arith.constant 0 : index
    %1 = vector.load %arg2[%c0_1, %c0_2] : memref<32x64xf32, #tpu.memory_space<vmem>>, vector<32x64xf32>
    %cst = arith.constant dense<0.000000e+00> : vector<8x64xf32>
    %2 = tpu.matmul %0, %1, %cst {dimension_numbers = #tpu.dot_dimension_numbers<[1], [0], [0], [1], [0, 0, 1, 1], [], []>} : vector<8x32xf32>, vector<32x64xf32>, vector<8x64xf32> -> vector<8x64xf32>
    %c0_3 = arith.constant 0 : index
    %c0_4 = arith.constant 0 : index
    %3 = vector.load %arg3[%c0_3, %c0_4] : memref<1x64xf32, #tpu.memory_space<vmem>>, vector<1x64xf32>
    %4 = vector.broadcast %3 : vector<1x64xf32> to vector<8x64xf32>
    %5 = arith.addf %2, %4 : vector<8x64xf32>
    %cst_5 = arith.constant 0.000000e+00 : f32
    %6 = vector.broadcast %cst_5 : f32 to vector<8x64xf32>
    %7 = arith.maximumf %5, %6 : vector<8x64xf32>
    %c0_6 = arith.constant 0 : index
    %c0_7 = arith.constant 0 : index
    %8 = vector.load %arg4[%c0_6, %c0_7] : memref<64x8xf32, #tpu.memory_space<vmem>>, vector<64x8xf32>
    %cst_8 = arith.constant dense<0.000000e+00> : vector<8x8xf32>
    %9 = tpu.matmul %7, %8, %cst_8 {dimension_numbers = #tpu.dot_dimension_numbers<[1], [0], [0], [1], [0, 0, 1, 1], [], []>} : vector<8x64xf32>, vector<64x8xf32>, vector<8x8xf32> -> vector<8x8xf32>
    %c0_9 = arith.constant 0 : index
    %c0_10 = arith.constant 0 : index
    %10 = vector.load %arg5[%c0_9, %c0_10] : memref<1x8xf32, #tpu.memory_space<vmem>>, vector<1x8xf32>
    %11 = vector.broadcast %10 : vector<1x8xf32> to vector<8x8xf32>
    %12 = arith.addf %9, %11 : vector<8x8xf32>
    %c0_11 = arith.constant 0 : index
    %c0_12 = arith.constant 0 : index
    %13 = vector.load %arg6[%c0_11, %c0_12] : memref<8x8xf32, #tpu.memory_space<vmem>>, vector<8x8xf32>
    tpu.vector_store %arg6[%c0_11, %c0_12], %12 {strides = array<i32>} : memref<8x8xf32, #tpu.memory_space<vmem>>, vector<8x8xf32>,
    return
  }
  func.func @transform_0(%arg0: i32) -> (i32, i32) {
    %c0_i32 = arith.constant 0 : i32
    %c0_i32_0 = arith.constant 0 : i32
    return %arg0, %c0_i32 : i32, i32
  }
  func.func @transform_1(%arg0: i32) -> (i32, i32) {
    %c0_i32 = arith.constant 0 : i32
    %c0_i32_0 = arith.constant 0 : i32
    %c0_i32_1 = arith.constant 0 : i32
    return %c0_i32, %c0_i32_0 : i32, i32
  }
  func.func @transform_2(%arg0: i32) -> (i32, i32) {
    %c0_i32 = arith.constant 0 : i32
    %c0_i32_0 = arith.constant 0 : i32
    %c0_i32_1 = arith.constant 0 : i32
    return %c0_i32, %c0_i32_0 : i32, i32
  }
  func.func @transform_3(%arg0: i32) -> (i32, i32) {
    %c0_i32 = arith.constant 0 : i32
    %c0_i32_0 = arith.constant 0 : i32
    %c0_i32_1 = arith.constant 0 : i32
    return %c0_i32, %c0_i32_0 : i32, i32
  }
  func.func @transform_4(%arg0: i32) -> (i32, i32) {
    %c0_i32 = arith.constant 0 : i32
    %c0_i32_0 = arith.constant 0 : i32
    %c0_i32_1 = arith.constant 0 : i32
    return %c0_i32, %c0_i32_0 : i32, i32
  }
  func.func @transform_5(%arg0: i32) -> (i32, i32) {
    %c0_i32 = arith.constant 0 : i32
    %c0_i32_0 = arith.constant 0 : i32
    return %arg0, %c0_i32 : i32, i32
  }
}

</mosaic_0001>

<llo_original>
// kernel: simple_nn_forward.1
$region0: #{simple_nn_forward.1}
  #allocation0 [shape = 'u32[]', space=smem, size = 0x4, offset = 0x4, fixed_abs, tag = 'smem constant byte address 0x4 - core index']
  #allocation1 [shape = 'u32[72,128]{1,0:T(1,128)}', space=vmem, size = 0x9000, scoped, tag = 'internal scratch']
  %s0 = inlined_call_operand.vmem [shape: f32[8,32], index: 0, kind: input, shape index: {}]
  %s1 = inlined_call_operand.vmem [shape: f32[32,64], index: 1, kind: input, shape index: {}]
  %s2 = inlined_call_operand.vmem [shape: f32[1,64], index: 2, kind: input, shape index: {}]
  %s3 = inlined_call_operand.vmem [shape: f32[64,8], index: 3, kind: input, shape index: {}]
  %s4 = inlined_call_operand.vmem [shape: f32[1,8], index: 4, kind: input, shape index: {}]
  %s5 = inlined_call_operand.hbm [shape: f32[8,8], index: 5, kind: output, shape index: {}]
  %s6 = sld [smem:[#allocation0]]
  $region30: #{simple_nn_forward.1} parent=0
    _
  %s8 = ssub.s32 1, %s6
  %s9 = scalar_select 0, %s8, %s6
  $region1: #{simple_nn_forward.1} parent=0
    #allocation2 [shape = 'u8[4096]{0}', space=vmem, size = 0x1000, scoped, tag = 'output window, operand 0, single buffered']
    #allocation3 [shape = 's32[1]{0}', space=sflag, size = 0x4, scoped, tag = 'scoped memory for simple_nn_forward.1']
    %10 = vsyncpa [#allocation3], 0
    // Predicated region
    $region2: #{simple_nn_forward.1} parent=1 // pred_check
      _
    $region3: #{simple_nn_forward.1} parent=1 // pred_check_branch
      %12 = sbr.rel (0) target = $region5
    $region4: #{simple_nn_forward.1} parent=1 // pred_region
      _
    $region5: #{simple_nn_forward.1} parent=1 // pred_fallthru
      _
    // Predicated region
    $region6: #{simple_nn_forward.1} parent=1 // pred_check
      _
    $region7: #{simple_nn_forward.1} parent=1 // pred_check_branch
      %14 = sbr.rel (0) target = $region9
    $region8: #{simple_nn_forward.1} parent=1 // pred_region
      _
    $region9: #{simple_nn_forward.1} parent=1 // pred_fallthru
      _
    // Predicated region
    $region10: #{simple_nn_forward.1} parent=1 // pred_check
      _
    $region11: #{simple_nn_forward.1} parent=1 // pred_check_branch
      %16 = sbr.rel (0) target = $region13
    $region12: #{simple_nn_forward.1} parent=1 // pred_region
      _
    $region13: #{simple_nn_forward.1} parent=1 // pred_fallthru
      _
    // Predicated region
    $region14: #{simple_nn_forward.1} parent=1 // pred_check
      _
    $region15: #{simple_nn_forward.1} parent=1 // pred_check_branch
      %18 = sbr.rel (0) target = $region17
    $region16: #{simple_nn_forward.1} parent=1 // pred_region
      _
    $region17: #{simple_nn_forward.1} parent=1 // pred_fallthru
      _
    // Predicated region
    $region18: #{simple_nn_forward.1} parent=1 // pred_check
      _
    $region19: #{simple_nn_forward.1} parent=1 // pred_check_branch
      %20 = sbr.rel (0) target = $region21
    $region20: #{simple_nn_forward.1} parent=1 // pred_region
      _
    $region21: #{simple_nn_forward.1} parent=1 // pred_fallthru
      _
    %v21 = vld [vmem:[%s0] sm:$0xff]
    %v22 = vld [vmem:[%s1] sm:$0xff]
    %v23 = vld [vmem:[%s1 + $0x8] sm:$0xff]
    %v24 = vld [vmem:[%s1 + $0x10] sm:$0xff]
    %v25 = vld [vmem:[%s1 + $0x18] sm:$0xff]
    %v26 = vld [vmem:[%s2] sm:$0x1]
    %v28 = vperm.slane %v26, 0
    %vm30 = vcmask 261120
    %v32 = vsel %vm30, %v21, 0
    %34 = vmatpush.msra.mxu0 0.0
    %35 = vmatpush.msra.mxu0 0.0
    %36 = vmatpush.msra.mxu0 0.0
    %37 = vmatpush.msra.mxu0 0.0
    %38 = vmatpush.msra.mxu0 0.0
    %39 = vmatpush.msra.mxu0 0.0
    %40 = vmatpush.msra.mxu0 0.0
    %41 = vmatpush.msra.mxu0 0.0
    %42 = vmatpush.msra.mxu0 0.0
    %43 = vmatpush.msra.mxu0 0.0
    %44 = vmatpush.msra.mxu0 0.0
    %45 = vmatpush.msra.mxu0 0.0
    %46 = vmatpush.msra.mxu0 %v25
    %47 = vmatpush.msra.mxu0 %v24
    %48 = vmatpush.msra.mxu0 %v23
    %49 = vmatpush.msra.mxu0 %v22
    %50 = vmatmul.f32.gmra.mxu0 %v32
    %v51 = vpop.f32.mrf.mxu0
    %v52 = vadd.f32 %v28, %v51
    %53 = vdwg.mxu0
    %v54 = vmax.f32 %v52, 0.0
    %v55 = vld [vmem:[%s3] sm:$0xff]
    %v56 = vld [vmem:[%s3 + $0x8] sm:$0xff]
    %v57 = vld [vmem:[%s3 + $0x10] sm:$0xff]
    %v58 = vld [vmem:[%s3 + $0x18] sm:$0xff]
    %v59 = vld [vmem:[%s3 + $0x20] sm:$0xff]
    %v60 = vld [vmem:[%s3 + $0x28] sm:$0xff]
    %v61 = vld [vmem:[%s3 + $0x30] sm:$0xff]
    %v62 = vld [vmem:[%s3 + $0x38] sm:$0xff]
    %v63 = vld [vmem:[%s4] sm:$0x1]
    %v65 = vperm.slane %v63, 0
    %vm67 = vcmask 523264
    %v69 = vsel %vm67, %v54, 0
    %71 = vmatpush.msra.mxu0 0.0
    %72 = vmatpush.msra.mxu0 0.0
    %73 = vmatpush.msra.mxu0 0.0
    %74 = vmatpush.msra.mxu0 0.0
    %75 = vmatpush.msra.mxu0 0.0
    %76 = vmatpush.msra.mxu0 0.0
    %77 = vmatpush.msra.mxu0 0.0
    %78 = vmatpush.msra.mxu0 0.0
    %79 = vmatpush.msra.mxu0 %v62
    %80 = vmatpush.msra.mxu0 %v61
    %81 = vmatpush.msra.mxu0 %v60
    %82 = vmatpush.msra.mxu0 %v59
    %83 = vmatpush.msra.mxu0 %v58
    %84 = vmatpush.msra.mxu0 %v57
    %85 = vmatpush.msra.mxu0 %v56
    %86 = vmatpush.msra.mxu0 %v55
    %87 = vmatmul.f32.gmra.mxu0 %v69
    %v88 = vpop.f32.mrf.mxu0
    %v89 = vadd.f32 %v65, %v88
    %90 = vdwg.mxu0
    %vm91 = vcmask 64512
    %92 = vst.msk [vmem:[#allocation2] sm:$0xff] %vm91, %v89
    // Predicated region
    $region22: #{simple_nn_forward.1} parent=1 // pred_check
      _
    $region23: #{simple_nn_forward.1} parent=1 // pred_check_branch
      %94 = sbr.rel (0) target = $region25
    $region24: #{simple_nn_forward.1} parent=1 // pred_region
      %96 = vsyncadd [#allocation3], 0
      %s98 = sshll.u32 [#allocation2], 4
      %s99 = int_to_ptr.vmem [resolvable:$true] %s98
      %s100 = sshll.u32 %s5, 4
      %s101 = int_to_ptr.hbm [resolvable:$true] %s100
      %103 = dma.vmem_to_hbm [thread:$0]  %s99, 128, %s101, [#allocation3]
    $region25: #{simple_nn_forward.1} parent=1 // pred_fallthru
      _
    // Predicated region
    $region26: #{simple_nn_forward.1} parent=1 // pred_check
      _
    $region27: #{simple_nn_forward.1} parent=1 // pred_check_branch
      %105 = sbr.rel (0) target = $region29
    $region28: #{simple_nn_forward.1} parent=1 // pred_region
      %107 = dma.done [#allocation3], 128
    $region29: #{simple_nn_forward.1} parent=1 // pred_fallthru
      _
    %108 = vsyncpa [#allocation3], 1

</llo_original>
